<compile_context>
chip_gen: v7x
topology: tpu7x:2x2x1
jax: 0.10.0
libtpu: 0.0.40
codegen_flags: <defaults>
</compile_context>

<pallas_src>
import functools

import jax
import jax.numpy as jnp
from jax import lax
from jax.experimental import pallas as pl
from jax.experimental.pallas import tpu as pltpu

_VMEM_LIMIT = 64 * 1024 * 1024  # explicit scoped-VMEM budget (safe on v5e/v6e/v7x)


def _pick_tile(n, target):
    """Largest tile <= target that divides n (falls back to n for small/odd sizes)."""
    t = target
    while t >= 8:
        if n % t == 0:
            return t
        t //= 2
    return n


# ---------------------------------------------------------------------------
# Kernel 1: fused LayerNorm + Q/K/V projections
#   grid over row tiles of (BT, D); weights resident (bf16), LN math in f32.
# ---------------------------------------------------------------------------
def _ln_qkv_kernel(x_ref, g_ref, b_ref, wq_ref, wk_ref, wv_ref,
                   bq_ref, bk_ref, bv_ref, q_ref, k_ref, v_ref):
    x = x_ref[...].astype(jnp.float32)                      # (tm, D)
    mean = jnp.mean(x, axis=-1, keepdims=True)
    var = jnp.mean(jnp.square(x - mean), axis=-1, keepdims=True)
    xn = (x - mean) * lax.rsqrt(var + 1e-5)
    xn = (xn * g_ref[...] + b_ref[...]).astype(jnp.bfloat16)  # bf16 MXU operand
    q = jnp.dot(xn, wq_ref[...], preferred_element_type=jnp.float32) + bq_ref[...]
    k = jnp.dot(xn, wk_ref[...], preferred_element_type=jnp.float32) + bk_ref[...]
    v = jnp.dot(xn, wv_ref[...], preferred_element_type=jnp.float32) + bv_ref[...]
    q_ref[...] = q.astype(q_ref.dtype)
    k_ref[...] = k.astype(k_ref.dtype)
    v_ref[...] = v.astype(v_ref.dtype)


def ln_qkv(x2d, gamma, beta, w_q, w_k, w_v, b_q, b_k, b_v, *, row_tile=256):
    BT, D = x2d.shape
    tm = _pick_tile(BT, row_tile)
    row_spec = pl.BlockSpec((tm, D), lambda i: (i, 0))
    vec_spec = pl.BlockSpec((1, D), lambda i: (0, 0))
    mat_spec = pl.BlockSpec((D, D), lambda i: (0, 0))
    out = jax.ShapeDtypeStruct((BT, D), jnp.bfloat16)
    return pl.pallas_call(
        _ln_qkv_kernel,
        grid=(BT // tm,),
        in_specs=[row_spec, vec_spec, vec_spec,
                  mat_spec, mat_spec, mat_spec,
                  vec_spec, vec_spec, vec_spec],
        out_specs=(row_spec, row_spec, row_spec),
        out_shape=(out, out, out),
        compiler_params=pltpu.CompilerParams(
            dimension_semantics=("parallel",),
            vmem_limit_bytes=_VMEM_LIMIT),
    )(x2d, gamma, beta, w_q, w_k, w_v, b_q, b_k, b_v)


# ---------------------------------------------------------------------------
# Kernel 2: multi-head attention over (B, T, D) tensors with heads packed in lanes.
#   grid (B, T//tq); q block (1, tq, D), k/v blocks (1, T, D); output block is
#   lane-dense (1, tq, D).  Attention maps (B, H, T, T) written only if requested.
# ---------------------------------------------------------------------------
def _attn_kernel(q_ref, k_ref, v_ref, o_ref, att_ref=None, *,
                 num_heads, head_dim, scale):
    q = q_ref[0]                                            # (tq, D) bf16
    k = k_ref[0]                                            # (T,  D) bf16
    v = v_ref[0]                                            # (T,  D) bf16
    outs = []
    for h in range(num_heads):                              # static unroll over heads
        sl = slice(h * head_dim, (h + 1) * head_dim)
        qh, kh, vh = q[:, sl], k[:, sl], v[:, sl]
        # q . k^T without materializing a transpose: contract last dims on the MXU.
        s = lax.dot_general(qh, kh, (((1,), (1,)), ((), ())),
                            preferred_element_type=jnp.float32)
        s = s * scale
        s = s - jnp.max(s, axis=-1, keepdims=True)
        p = jnp.exp(s)
        p = p * pl.reciprocal(jnp.sum(p, axis=-1, keepdims=True), approx=True)
        if att_ref is not None:
            att_ref[0, h] = p.astype(att_ref.dtype)
        outs.append(jnp.dot(p.astype(jnp.bfloat16), vh,
                            preferred_element_type=jnp.float32))
    o_ref[0] = jnp.concatenate(outs, axis=-1).astype(o_ref.dtype)  # lane-dense (tq, D)


def mh_attention(q, k, v, *, num_heads, q_tile=128, return_att=True):
    # q, k, v: (B, T, D) bf16 with heads packed along D.
    B, T, D = q.shape
    head_dim = D // num_heads
    tq = _pick_tile(T, q_tile)
    scale = 1.0 / (head_dim ** 0.5)
    kernel = functools.partial(_attn_kernel, num_heads=num_heads,
                               head_dim=head_dim, scale=scale)
    q_spec = pl.BlockSpec((1, tq, D), lambda b, i: (b, i, 0))
    kv_spec = pl.BlockSpec((1, T, D), lambda b, i: (b, 0, 0))
    out_shape = [jax.ShapeDtypeStruct((B, T, D), jnp.bfloat16)]
    out_specs = [pl.BlockSpec((1, tq, D), lambda b, i: (b, i, 0))]
    if return_att:
        out_shape.append(jax.ShapeDtypeStruct((B, num_heads, T, T), jnp.float32))
        out_specs.append(pl.BlockSpec((1, num_heads, tq, T),
                                      lambda b, i: (b, 0, i, 0)))
    res = pl.pallas_call(
        kernel,
        grid=(B, T // tq),
        in_specs=[q_spec, kv_spec, kv_spec],
        out_specs=tuple(out_specs),
        out_shape=tuple(out_shape),
        compiler_params=pltpu.CompilerParams(
            dimension_semantics=("parallel", "parallel"),
            vmem_limit_bytes=_VMEM_LIMIT),
    )(q, k, v)
    # TODO(synk): flash-style streaming over KV tiles (online softmax) for very long T.
    return (res[0], res[1]) if return_att else (res[0], None)


# ---------------------------------------------------------------------------
# Kernel 3: output projection, row-tiled, bf16 operands, f32 output.
# ---------------------------------------------------------------------------
def _out_proj_kernel(x_ref, w_ref, b_ref, o_ref):
    y = jnp.dot(x_ref[...], w_ref[...], preferred_element_type=jnp.float32)
    o_ref[...] = (y + b_ref[...]).astype(o_ref.dtype)


def out_proj(x2d, w_o, b_o, *, row_tile=256):
    BT, D = x2d.shape
    tm = _pick_tile(BT, row_tile)
    return pl.pallas_call(
        _out_proj_kernel,
        grid=(BT // tm,),
        in_specs=[pl.BlockSpec((tm, D), lambda i: (i, 0)),
                  pl.BlockSpec((D, D), lambda i: (0, 0)),
                  pl.BlockSpec((1, D), lambda i: (0, 0))],
        out_specs=pl.BlockSpec((tm, D), lambda i: (i, 0)),
        out_shape=jax.ShapeDtypeStruct((BT, D), jnp.float32),
        compiler_params=pltpu.CompilerParams(
            dimension_semantics=("parallel",),
            vmem_limit_bytes=_VMEM_LIMIT),
    )(x2d, w_o, b_o)


# ---------------------------------------------------------------------------
# Full module forward
# ---------------------------------------------------------------------------
def attention_module_forward(params, x, *, return_att=True):
    """x: (B, T, D) f32 -> (out (B,T,D) f32, att_maps (B,H,T,T) f32 | None, hidden=None)."""
    B, T, D = x.shape
    H = params["num_heads"]
    x2d = x.reshape(B * T, D)

    q2d, k2d, v2d = ln_qkv(x2d, params["ln_gamma"], params["ln_beta"],
                           params["w_q"], params["w_k"], params["w_v"],
                           params["b_q"], params["b_k"], params["b_v"])
    # reshape (BT,D)->(B,T,D) is metadata-only; no HBM transpose passes between kernels.
    q = q2d.reshape(B, T, D)
    k = k2d.reshape(B, T, D)
    v = v2d.reshape(B, T, D)

    o, att_maps = mh_attention(q, k, v, num_heads=H, return_att=return_att)
    y = out_proj(o.reshape(B * T, D), params["w_o"], params["b_o"])
    # Dropout: identity in eval mode.
    # TODO(synk): causal masking / external `mask` / cross-attention (x_cross) /
    # recurrent `hidden` are not wired (module here runs causal=False, mask=None, self-attn).
    return y.reshape(B, T, D), att_maps, None


def init_params(key, dim_model, num_heads):
    ks = jax.random.split(key, 8)
    s = 1.0 / (dim_model ** 0.5)

    def w(k):  # weights stored in bf16 (MXU operands, halved HBM/VMEM traffic)
        return (jax.random.normal(k, (dim_model, dim_model), jnp.float32) * s
                ).astype(jnp.bfloat16)

    def b(k):
        return jax.random.normal(k, (1, dim_model), jnp.float32) * 0.01

    return {
        "num_heads": num_heads,
        "ln_gamma": jnp.ones((1, dim_model), jnp.float32),
        "ln_beta": jnp.zeros((1, dim_model), jnp.float32),
        "w_q": w(ks[0]), "w_k": w(ks[1]), "w_v": w(ks[2]), "w_o": w(ks[3]),
        "b_q": b(ks[4]), "b_k": b(ks[5]), "b_v": b(ks[6]), "b_o": b(ks[7]),
    }


# ---------------------------------------------------------------------------
# Pure-JAX reference (emulates the kernel's bf16 casts so tolerances can stay tight)
# ---------------------------------------------------------------------------
def _reference_forward(params, x):
    B, T, D = x.shape
    H = params["num_heads"]
    hd = D // H

    def b16(t):
        return t.astype(jnp.bfloat16).astype(jnp.float32)

    g = params["ln_gamma"].astype(jnp.float32)
    be = params["ln_beta"].astype(jnp.float32)
    mean = jnp.mean(x, axis=-1, keepdims=True)
    var = jnp.mean(jnp.square(x - mean), axis=-1, keepdims=True)
    xn = b16((x - mean) / jnp.sqrt(var + 1e-5) * g + be)

    def proj(w, b):
        return b16(jnp.einsum("btd,de->bte", xn, w.astype(jnp.float32))
                   + b.astype(jnp.float32))

    q = proj(params["w_q"], params["b_q"])
    k = proj(params["w_k"], params["b_k"])
    v = proj(params["w_v"], params["b_v"])

    heads = lambda t: t.reshape(B, T, H, hd).transpose(0, 2, 1, 3)
    qh, kh, vh = heads(q), heads(k), heads(v)
    s = jnp.einsum("bhqd,bhkd->bhqk", qh, kh) / jnp.sqrt(float(hd))
    p = jax.nn.softmax(s, axis=-1)
    o = jnp.einsum("bhqk,bhkd->bhqd", b16(p), vh)
    o = b16(o.transpose(0, 2, 1, 3).reshape(B, T, D))
    y = jnp.einsum("btd,de->bte", o, params["w_o"].astype(jnp.float32)) \
        + params["b_o"].astype(jnp.float32)
    return y, p


if __name__ == "__main__":
    key = jax.random.PRNGKey(0)
    B, T, D, H = 2, 8, 32, 4
    kx, kp = jax.random.split(key)
    x = jax.random.normal(kx, (B, T, D), jnp.float32)
    params = init_params(kp, D, H)

    out, att_maps, hidden = attention_module_forward(params, x, return_att=True)
    out = jax.block_until_ready(out)
    att_maps = jax.block_until_ready(att_maps)

    assert out.shape == (B, T, D)
    assert att_maps.shape == (B, H, T, T)
    assert hidden is None
    # softmax rows sum to 1 (approx-reciprocal on EUP -> loose tolerance)
    assert jnp.allclose(jnp.sum(att_maps, axis=-1), 1.0, atol=5e-3)

    # compare against a precision-matched pure-JAX reference
    y_ref, p_ref = _reference_forward(params, x)
    assert float(jnp.max(jnp.abs(att_maps - p_ref))) < 5e-3
    assert float(jnp.max(jnp.abs(out - y_ref))) < 2e-2

    print("KERNEL_OK")
</pallas_src>

<mosaic_0001>
module attributes {stable_mosaic.version = 11 : i64} {
  func.func @_ln_qkv_kernel(%arg0: i32, %arg1: memref<16x32xf32, #tpu.memory_space<vmem>>, %arg2: memref<1x32xf32, #tpu.memory_space<vmem>>, %arg3: memref<1x32xf32, #tpu.memory_space<vmem>>, %arg4: memref<32x32xbf16, #tpu.memory_space<vmem>>, %arg5: memref<32x32xbf16, #tpu.memory_space<vmem>>, %arg6: memref<32x32xbf16, #tpu.memory_space<vmem>>, %arg7: memref<1x32xf32, #tpu.memory_space<vmem>>, %arg8: memref<1x32xf32, #tpu.memory_space<vmem>>, %arg9: memref<1x32xf32, #tpu.memory_space<vmem>>, %arg10: memref<16x32xbf16, #tpu.memory_space<vmem>>, %arg11: memref<16x32xbf16, #tpu.memory_space<vmem>>, %arg12: memref<16x32xbf16, #tpu.memory_space<vmem>>) attributes {dimension_semantics = [#tpu.dimension_semantics<parallel>], iteration_bounds = array<i64: 1>, scalar_prefetch = 0 : i64, scratch_operands = 0 : i64, tpu.core_type = #tpu.core_type<tc>, window_params = [{transform_indices = @transform_0, window_bounds = array<i64: 16, 32>}, {pipeline_mode = #tpu.pipeline_mode<synchronous>, transform_indices = @transform_1, window_bounds = array<i64: 1, 32>}, {pipeline_mode = #tpu.pipeline_mode<synchronous>, transform_indices = @transform_2, window_bounds = array<i64: 1, 32>}, {pipeline_mode = #tpu.pipeline_mode<synchronous>, transform_indices = @transform_3, window_bounds = array<i64: 32, 32>}, {pipeline_mode = #tpu.pipeline_mode<synchronous>, transform_indices = @transform_4, window_bounds = array<i64: 32, 32>}, {pipeline_mode = #tpu.pipeline_mode<synchronous>, transform_indices = @transform_5, window_bounds = array<i64: 32, 32>}, {pipeline_mode = #tpu.pipeline_mode<synchronous>, transform_indices = @transform_6, window_bounds = array<i64: 1, 32>}, {pipeline_mode = #tpu.pipeline_mode<synchronous>, transform_indices = @transform_7, window_bounds = array<i64: 1, 32>}, {pipeline_mode = #tpu.pipeline_mode<synchronous>, transform_indices = @transform_8, window_bounds = array<i64: 1, 32>}, {transform_indices = @transform_9, window_bounds = array<i64: 16, 32>}, {transform_indices = @transform_10, window_bounds = array<i64: 16, 32>}, {transform_indices = @transform_11, window_bounds = array<i64: 16, 32>}]} {
    %c0 = arith.constant 0 : index
    %c0_0 = arith.constant 0 : index
    %0 = vector.load %arg1[%c0, %c0_0] : memref<16x32xf32, #tpu.memory_space<vmem>>, vector<16x32xf32>
    %cst = arith.constant dense<0.000000e+00> : vector<16xf32>
    %1 = vector.multi_reduction <add>, %0, %cst [1] : vector<16x32xf32> to vector<16xf32>
    %2 = vector.shape_cast %1 : vector<16xf32> to vector<16x1xf32>
    %cst_1 = arith.constant 3.200000e+01 : f32
    %3 = vector.broadcast %cst_1 : f32 to vector<16x1xf32>
    %4 = arith.divf %2, %3 : vector<16x1xf32>
    %5 = vector.broadcast %4 : vector<16x1xf32> to vector<16x32xf32>
    %6 = arith.subf %0, %5 : vector<16x32xf32>
    %7 = arith.mulf %6, %6 : vector<16x32xf32>
    %cst_2 = arith.constant dense<0.000000e+00> : vector<16xf32>
    %8 = vector.multi_reduction <add>, %7, %cst_2 [1] : vector<16x32xf32> to vector<16xf32>
    %9 = vector.shape_cast %8 : vector<16xf32> to vector<16x1xf32>
    %cst_3 = arith.constant 3.200000e+01 : f32
    %10 = vector.broadcast %cst_3 : f32 to vector<16x1xf32>
    %11 = arith.divf %9, %10 : vector<16x1xf32>
    %12 = vector.broadcast %4 : vector<16x1xf32> to vector<16x32xf32>
    %13 = arith.subf %0, %12 : vector<16x32xf32>
    %cst_4 = arith.constant 9.99999974E-6 : f32
    %14 = vector.broadcast %cst_4 : f32 to vector<16x1xf32>
    %15 = arith.addf %11, %14 : vector<16x1xf32>
    %16 = math.rsqrt %15 : vector<16x1xf32>
    %17 = vector.broadcast %16 : vector<16x1xf32> to vector<16x32xf32>
    %18 = arith.mulf %13, %17 : vector<16x32xf32>
    %c0_5 = arith.constant 0 : index
    %c0_6 = arith.constant 0 : index
    %19 = vector.load %arg2[%c0_5, %c0_6] : memref<1x32xf32, #tpu.memory_space<vmem>>, vector<1x32xf32>
    %20 = vector.broadcast %19 : vector<1x32xf32> to vector<16x32xf32>
    %21 = arith.mulf %18, %20 : vector<16x32xf32>
    %c0_7 = arith.constant 0 : index
    %c0_8 = arith.constant 0 : index
    %22 = vector.load %arg3[%c0_7, %c0_8] : memref<1x32xf32, #tpu.memory_space<vmem>>, vector<1x32xf32>
    %23 = vector.broadcast %22 : vector<1x32xf32> to vector<16x32xf32>
    %24 = arith.addf %21, %23 : vector<16x32xf32>
    %25 = arith.truncf %24 : vector<16x32xf32> to vector<16x32xbf16>
    %c0_9 = arith.constant 0 : index
    %c0_10 = arith.constant 0 : index
    %26 = vector.load %arg4[%c0_9, %c0_10] : memref<32x32xbf16, #tpu.memory_space<vmem>>, vector<32x32xbf16>
    %cst_11 = arith.constant dense<0.000000e+00> : vector<16x32xf32>
    %27 = tpu.matmul %25, %26, %cst_11 {dimension_numbers = #tpu.dot_dimension_numbers<[1], [0], [0], [1], [0, 0, 1, 1], [], []>} : vector<16x32xbf16>, vector<32x32xbf16>, vector<16x32xf32> -> vector<16x32xf32>
    %c0_12 = arith.constant 0 : index
    %c0_13 = arith.constant 0 : index
    %28 = vector.load %arg7[%c0_12, %c0_13] : memref<1x32xf32, #tpu.memory_space<vmem>>, vector<1x32xf32>
    %29 = vector.broadcast %28 : vector<1x32xf32> to vector<16x32xf32>
    %30 = arith.addf %27, %29 : vector<16x32xf32>
    %c0_14 = arith.constant 0 : index
    %c0_15 = arith.constant 0 : index
    %31 = vector.load %arg5[%c0_14, %c0_15] : memref<32x32xbf16, #tpu.memory_space<vmem>>, vector<32x32xbf16>
    %cst_16 = arith.constant dense<0.000000e+00> : vector<16x32xf32>
    %32 = tpu.matmul %25, %31, %cst_16 {dimension_numbers = #tpu.dot_dimension_numbers<[1], [0], [0], [1], [0, 0, 1, 1], [], []>} : vector<16x32xbf16>, vector<32x32xbf16>, vector<16x32xf32> -> vector<16x32xf32>
    %c0_17 = arith.constant 0 : index
    %c0_18 = arith.constant 0 : index
    %33 = vector.load %arg8[%c0_17, %c0_18] : memref<1x32xf32, #tpu.memory_space<vmem>>, vector<1x32xf32>
    %34 = vector.broadcast %33 : vector<1x32xf32> to vector<16x32xf32>
    %35 = arith.addf %32, %34 : vector<16x32xf32>
    %c0_19 = arith.constant 0 : index
    %c0_20 = arith.constant 0 : index
    %36 = vector.load %arg6[%c0_19, %c0_20] : memref<32x32xbf16, #tpu.memory_space<vmem>>, vector<32x32xbf16>
    %cst_21 = arith.constant dense<0.000000e+00> : vector<16x32xf32>
    %37 = tpu.matmul %25, %36, %cst_21 {dimension_numbers = #tpu.dot_dimension_numbers<[1], [0], [0], [1], [0, 0, 1, 1], [], []>} : vector<16x32xbf16>, vector<32x32xbf16>, vector<16x32xf32> -> vector<16x32xf32>
    %c0_22 = arith.constant 0 : index
    %c0_23 = arith.constant 0 : index
    %38 = vector.load %arg9[%c0_22, %c0_23] : memref<1x32xf32, #tpu.memory_space<vmem>>, vector<1x32xf32>
    %39 = vector.broadcast %38 : vector<1x32xf32> to vector<16x32xf32>
    %40 = arith.addf %37, %39 : vector<16x32xf32>
    %41 = arith.truncf %30 : vector<16x32xf32> to vector<16x32xbf16>
    %c0_24 = arith.constant 0 : index
    %c0_25 = arith.constant 0 : index
    %42 = vector.load %arg10[%c0_24, %c0_25] : memref<16x32xbf16, #tpu.memory_space<vmem>>, vector<16x32xbf16>
    tpu.vector_store %arg10[%c0_24, %c0_25], %41 {strides = array<i32>} : memref<16x32xbf16, #tpu.memory_space<vmem>>, vector<16x32xbf16>,
    %43 = arith.truncf %35 : vector<16x32xf32> to vector<16x32xbf16>
    %c0_26 = arith.constant 0 : index
    %c0_27 = arith.constant 0 : index
    %44 = vector.load %arg11[%c0_26, %c0_27] : memref<16x32xbf16, #tpu.memory_space<vmem>>, vector<16x32xbf16>
    tpu.vector_store %arg11[%c0_26, %c0_27], %43 {strides = array<i32>} : memref<16x32xbf16, #tpu.memory_space<vmem>>, vector<16x32xbf16>,
    %45 = arith.truncf %40 : vector<16x32xf32> to vector<16x32xbf16>
    %c0_28 = arith.constant 0 : index
    %c0_29 = arith.constant 0 : index
    %46 = vector.load %arg12[%c0_28, %c0_29] : memref<16x32xbf16, #tpu.memory_space<vmem>>, vector<16x32xbf16>
    tpu.vector_store %arg12[%c0_28, %c0_29], %45 {strides = array<i32>} : memref<16x32xbf16, #tpu.memory_space<vmem>>, vector<16x32xbf16>,
    return
  }
  func.func @transform_0(%arg0: i32) -> (i32, i32) {
    %c0_i32 = arith.constant 0 : i32
    %c0_i32_0 = arith.constant 0 : i32
    return %arg0, %c0_i32 : i32, i32
  }
  func.func @transform_1(%arg0: i32) -> (i32, i32) {
    %c0_i32 = arith.constant 0 : i32
    %c0_i32_0 = arith.constant 0 : i32
    %c0_i32_1 = arith.constant 0 : i32
    return %c0_i32, %c0_i32_0 : i32, i32
  }
  func.func @transform_2(%arg0: i32) -> (i32, i32) {
    %c0_i32 = arith.constant 0 : i32
    %c0_i32_0 = arith.constant 0 : i32
    %c0_i32_1 = arith.constant 0 : i32
    return %c0_i32, %c0_i32_0 : i32, i32
  }
  func.func @transform_3(%arg0: i32) -> (i32, i32) {
    %c0_i32 = arith.constant 0 : i32
    %c0_i32_0 = arith.constant 0 : i32
    %c0_i32_1 = arith.constant 0 : i32
    return %c0_i32, %c0_i32_0 : i32, i32
  }
  func.func @transform_4(%arg0: i32) -> (i32, i32) {
    %c0_i32 = arith.constant 0 : i32
    %c0_i32_0 = arith.constant 0 : i32
    %c0_i32_1 = arith.constant 0 : i32
    return %c0_i32, %c0_i32_0 : i32, i32
  }
  func.func @transform_5(%arg0: i32) -> (i32, i32) {
    %c0_i32 = arith.constant 0 : i32
    %c0_i32_0 = arith.constant 0 : i32
    %c0_i32_1 = arith.constant 0 : i32
    return %c0_i32, %c0_i32_0 : i32, i32
  }
  func.func @transform_6(%arg0: i32) -> (i32, i32) {
    %c0_i32 = arith.constant 0 : i32
    %c0_i32_0 = arith.constant 0 : i32
    %c0_i32_1 = arith.constant 0 : i32
    return %c0_i32, %c0_i32_0 : i32, i32
  }
  func.func @transform_7(%arg0: i32) -> (i32, i32) {
    %c0_i32 = arith.constant 0 : i32
    %c0_i32_0 = arith.constant 0 : i32
    %c0_i32_1 = arith.constant 0 : i32
    return %c0_i32, %c0_i32_0 : i32, i32
  }
  func.func @transform_8(%arg0: i32) -> (i32, i32) {
    %c0_i32 = arith.constant 0 : i32
    %c0_i32_0 = arith.constant 0 : i32
    %c0_i32_1 = arith.constant 0 : i32
    return %c0_i32, %c0_i32_0 : i32, i32
  }
  func.func @transform_9(%arg0: i32) -> (i32, i32) {
    %c0_i32 = arith.constant 0 : i32
    %c0_i32_0 = arith.constant 0 : i32
    return %arg0, %c0_i32 : i32, i32
  }
  func.func @transform_10(%arg0: i32) -> (i32, i32) {
    %c0_i32 = arith.constant 0 : i32
    %c0_i32_0 = arith.constant 0 : i32
    return %arg0, %c0_i32 : i32, i32
  }
  func.func @transform_11(%arg0: i32) -> (i32, i32) {
    %c0_i32 = arith.constant 0 : i32
    %c0_i32_0 = arith.constant 0 : i32
    return %arg0, %c0_i32 : i32, i32
  }
}

</mosaic_0001>

<llo_original>
// kernel: tpu_custom_call.1
$region0: #{tpu_custom_call.1}
  #allocation0 [shape = 'u32[]', space=smem, size = 0x4, offset = 0x4, fixed_abs, tag = 'smem constant byte address 0x4 - core index']
  #allocation1 [shape = 'u32[144,128]{1,0:T(1,128)}', space=vmem, size = 0x12000, scoped, tag = 'internal scratch']
  %s0 = inlined_call_operand.hbm [shape: f32[16,32], index: 0, kind: input, shape index: {}]
  %s1 = inlined_call_operand.hbm [shape: f32[1,32], index: 1, kind: input, shape index: {}]
  %s2 = inlined_call_operand.hbm [shape: f32[1,32], index: 2, kind: input, shape index: {}]
  %s3 = inlined_call_operand.hbm [shape: bf16[32,32], index: 3, kind: input, shape index: {}]
  %s4 = inlined_call_operand.hbm [shape: bf16[32,32], index: 4, kind: input, shape index: {}]
  %s5 = inlined_call_operand.hbm [shape: bf16[32,32], index: 5, kind: input, shape index: {}]
  %s6 = inlined_call_operand.hbm [shape: f32[1,32], index: 6, kind: input, shape index: {}]
  %s7 = inlined_call_operand.hbm [shape: f32[1,32], index: 7, kind: input, shape index: {}]
  %s8 = inlined_call_operand.hbm [shape: f32[1,32], index: 8, kind: input, shape index: {}]
  %s9 = inlined_call_operand.hbm [shape: bf16[16,32], index: 9, kind: output, shape index: {0}]
  %s10 = inlined_call_operand.hbm [shape: bf16[16,32], index: 10, kind: output, shape index: {1}]
  %s11 = inlined_call_operand.hbm [shape: bf16[16,32], index: 11, kind: output, shape index: {2}]
  %12 = xla_tuple %s9, %s10, %s11
  %s13 = sld [smem:[#allocation0]]
  $region98: #{tpu_custom_call.1} parent=0
    _
  %s15 = ssub.s32 1, %s13
  %s16 = scalar_select 0, %s15, %s13
  $region1: #{tpu_custom_call.1} parent=0
    #allocation2 [shape = 'u8[8192]{0}', space=vmem, size = 0x2000, scoped, tag = 'input window, operand 0, single buffered']
    #allocation3 [shape = 's32[1]{0}', space=sflag, size = 0x4, scoped, tag = 'scoped memory for tpu_custom_call.1']
    #allocation4 [shape = 's32[1]{0}', space=sflag, size = 0x4, scoped, tag = 'scoped memory for tpu_custom_call.1']
    #allocation5 [shape = 'u8[512]{0}', space=vmem, size = 0x400, scoped, tag = 'input window, operand 1, single buffered']
    #allocation6 [shape = 's32[1]{0}', space=sflag, size = 0x4, scoped, tag = 'scoped memory for tpu_custom_call.1']
    #allocation7 [shape = 'u8[512]{0}', space=vmem, size = 0x400, scoped, tag = 'input window, operand 2, single buffered']
    #allocation8 [shape = 'u8[8192]{0}', space=vmem, size = 0x2000, scoped, tag = 'input window, operand 3, single buffered']
    #allocation9 [shape = 's32[1]{0}', space=sflag, size = 0x4, scoped, tag = 'scoped memory for tpu_custom_call.1']
    #allocation10 [shape = 'u8[8192]{0}', space=vmem, size = 0x2000, scoped, tag = 'input window, operand 4, single buffered']
    #allocation11 [shape = 'u8[8192]{0}', space=vmem, size = 0x2000, scoped, tag = 'input window, operand 5, single buffered']
    #allocation12 [shape = 's32[1]{0}', space=sflag, size = 0x4, scoped, tag = 'scoped memory for tpu_custom_call.1']
    #allocation13 [shape = 'u8[512]{0}', space=vmem, size = 0x400, scoped, tag = 'input window, operand 6, single buffered']
    #allocation14 [shape = 'u8[512]{0}', space=vmem, size = 0x400, scoped, tag = 'input window, operand 7, single buffered']
    #allocation15 [shape = 's32[1]{0}', space=sflag, size = 0x4, scoped, tag = 'scoped memory for tpu_custom_call.1']
    #allocation16 [shape = 'u8[512]{0}', space=vmem, size = 0x400, scoped, tag = 'input window, operand 8, single buffered']
    #allocation17 [shape = 'u8[4096]{0}', space=vmem, size = 0x1000, scoped, tag = 'output window, operand 0, single buffered']
    #allocation18 [shape = 'u8[4096]{0}', space=vmem, size = 0x1000, scoped, tag = 'output window, operand 1, single buffered']
    #allocation19 [shape = 's32[1]{0}', space=sflag, size = 0x4, scoped, tag = 'scoped memory for tpu_custom_call.1']
    #allocation20 [shape = 'u8[4096]{0}', space=vmem, size = 0x1000, scoped, tag = 'output window, operand 2, single buffered']
    %17 = vsyncpa [#allocation3], 0
    %18 = vsyncpa [#allocation6], 0
    %19 = vsyncpa [#allocation9], 0
    %20 = vsyncpa [#allocation12], 0
    %21 = vsyncpa [#allocation15], 0
    %22 = vsyncpa [#allocation4], 0
    %23 = vsyncpa [#allocation19], 0
    // Predicated region
    $region2: #{tpu_custom_call.1} parent=1 // pred_check
      _
    $region3: #{tpu_custom_call.1} parent=1 // pred_check_branch
      %25 = sbr.rel (0) target = $region5
    $region4: #{tpu_custom_call.1} parent=1 // pred_region
      %s27 = ssub.s32 256, 256
      %28 = vsyncadd [#allocation3], %s27
      %s29 = sshll.u32 [#allocation2], 4
      %s30 = int_to_ptr.vmem [resolvable:$true] %s29
      %35 = dma.hbm_to_vmem [thread:$0]  %s0, 256, %s30, [#allocation3], 128, 128, 8
    $region5: #{tpu_custom_call.1} parent=1 // pred_fallthru
      _
    // Predicated region
    $region6: #{tpu_custom_call.1} parent=1 // pred_check
      _
    $region7: #{tpu_custom_call.1} parent=1 // pred_check_branch
      %37 = sbr.rel (0) target = $region9
    $region8: #{tpu_custom_call.1} parent=1 // pred_region
      %s39 = ssub.s32 16, 16
      %40 = vsyncadd [#allocation6], %s39
      %s42 = sshll.u32 [#allocation5], 4
      %s43 = int_to_ptr.vmem [resolvable:$true] %s42
      %45 = dma.hbm_to_vmem [thread:$0]  %s1, 16, %s43, [#allocation6]
    $region9: #{tpu_custom_call.1} parent=1 // pred_fallthru
      _
    // Predicated region
    $region10: #{tpu_custom_call.1} parent=1 // pred_check
      _
    $region11: #{tpu_custom_call.1} parent=1 // pred_check_branch
      %47 = sbr.rel (0) target = $region13
    $region12: #{tpu_custom_call.1} parent=1 // pred_region
      %s49 = ssub.s32 16, 16
      %50 = vsyncadd [#allocation6], %s49
      %s52 = sshll.u32 [#allocation7], 4
      %s53 = int_to_ptr.vmem [resolvable:$true] %s52
      %55 = dma.hbm_to_vmem [thread:$0]  %s2, 16, %s53, [#allocation6]
    $region13: #{tpu_custom_call.1} parent=1 // pred_fallthru
      _
    // Predicated region
    $region14: #{tpu_custom_call.1} parent=1 // pred_check
      _
    $region15: #{tpu_custom_call.1} parent=1 // pred_check_branch
      %57 = sbr.rel (0) target = $region17
    $region16: #{tpu_custom_call.1} parent=1 // pred_region
      %s59 = ssub.s32 256, 256
      %60 = vsyncadd [#allocation9], %s59
      %s61 = sshll.u32 [#allocation8], 4
      %s62 = int_to_ptr.vmem [resolvable:$true] %s61
      %67 = dma.hbm_to_vmem [thread:$0]  %s3, 256, %s62, [#allocation9], 64, 64, 4
    $region17: #{tpu_custom_call.1} parent=1 // pred_fallthru
      _
    // Predicated region
    $region18: #{tpu_custom_call.1} parent=1 // pred_check
      _
    $region19: #{tpu_custom_call.1} parent=1 // pred_check_branch
      %69 = sbr.rel (0) target = $region21
    $region20: #{tpu_custom_call.1} parent=1 // pred_region
      %s71 = ssub.s32 256, 256
      %72 = vsyncadd [#allocation9], %s71
      %s73 = sshll.u32 [#allocation10], 4
      %s74 = int_to_ptr.vmem [resolvable:$true] %s73
      %79 = dma.hbm_to_vmem [thread:$0]  %s4, 256, %s74, [#allocation9], 64, 64, 4
    $region21: #{tpu_custom_call.1} parent=1 // pred_fallthru
      _
    // Predicated region
    $region22: #{tpu_custom_call.1} parent=1 // pred_check
      _
    $region23: #{tpu_custom_call.1} parent=1 // pred_check_branch
      %81 = sbr.rel (0) target = $region25
    $region24: #{tpu_custom_call.1} parent=1 // pred_region
      %s83 = ssub.s32 256, 256
      %84 = vsyncadd [#allocation12], %s83
      %s85 = sshll.u32 [#allocation11], 4
      %s86 = int_to_ptr.vmem [resolvable:$true] %s85
      %91 = dma.hbm_to_vmem [thread:$0]  %s5, 256, %s86, [#allocation12], 64, 64, 4
    $region25: #{tpu_custom_call.1} parent=1 // pred_fallthru
      _
    // Predicated region
    $region26: #{tpu_custom_call.1} parent=1 // pred_check
      _
    $region27: #{tpu_custom_call.1} parent=1 // pred_check_branch
      %93 = sbr.rel (0) target = $region29
    $region28: #{tpu_custom_call.1} parent=1 // pred_region
      %s95 = ssub.s32 16, 16
      %96 = vsyncadd [#allocation12], %s95
      %s98 = sshll.u32 [#allocation13], 4
      %s99 = int_to_ptr.vmem [resolvable:$true] %s98
      %101 = dma.hbm_to_vmem [thread:$0]  %s6, 16, %s99, [#allocation12]
    $region29: #{tpu_custom_call.1} parent=1 // pred_fallthru
      _
    // Predicated region
    $region30: #{tpu_custom_call.1} parent=1 // pred_check
      _
    $region31: #{tpu_custom_call.1} parent=1 // pred_check_branch
      %103 = sbr.rel (0) target = $region33
    $region32: #{tpu_custom_call.1} parent=1 // pred_region
      %s105 = ssub.s32 16, 16
      %106 = vsyncadd [#allocation15], %s105
      %s108 = sshll.u32 [#allocation14], 4
      %s109 = int_to_ptr.vmem [resolvable:$true] %s108
      %111 = dma.hbm_to_vmem [thread:$0]  %s7, 16, %s109, [#allocation15]
    $region33: #{tpu_custom_call.1} parent=1 // pred_fallthru
      _
    // Predicated region
    $region34: #{tpu_custom_call.1} parent=1 // pred_check
      _
    $region35: #{tpu_custom_call.1} parent=1 // pred_check_branch
      %113 = sbr.rel (0) target = $region37
    $region36: #{tpu_custom_call.1} parent=1 // pred_region
      %s115 = ssub.s32 16, 16
      %116 = vsyncadd [#allocation15], %s115
      %s118 = sshll.u32 [#allocation16], 4
      %s119 = int_to_ptr.vmem [resolvable:$true] %s118
      %121 = dma.hbm_to_vmem [thread:$0]  %s8, 16, %s119, [#allocation15]
    $region37: #{tpu_custom_call.1} parent=1 // pred_fallthru
      _
    // Predicated region
    $region38: #{tpu_custom_call.1} parent=1 // pred_check
      _
    $region39: #{tpu_custom_call.1} parent=1 // pred_check_branch
      %123 = sbr.rel (0) target = $region41
    $region40: #{tpu_custom_call.1} parent=1 // pred_region
      %124 = dma.done [#allocation3], 256
    $region41: #{tpu_custom_call.1} parent=1 // pred_fallthru
      _
    // Predicated region
    $region42: #{tpu_custom_call.1} parent=1 // pred_check
      _
    $region43: #{tpu_custom_call.1} parent=1 // pred_check_branch
      %126 = sbr.rel (0) target = $region45
    $region44: #{tpu_custom_call.1} parent=1 // pred_region
      %127 = dma.done [#allocation6], 16
    $region45: #{tpu_custom_call.1} parent=1 // pred_fallthru
      _
    // Predicated region
    $region46: #{tpu_custom_call.1} parent=1 // pred_check
      _
    $region47: #{tpu_custom_call.1} parent=1 // pred_check_branch
      %129 = sbr.rel (0) target = $region49
    $region48: #{tpu_custom_call.1} parent=1 // pred_region
      %130 = dma.done [#allocation6], 16
    $region49: #{tpu_custom_call.1} parent=1 // pred_fallthru
      _
    // Predicated region
    $region50: #{tpu_custom_call.1} parent=1 // pred_check
      _
    $region51: #{tpu_custom_call.1} parent=1 // pred_check_branch
      %132 = sbr.rel (0) target = $region53
    $region52: #{tpu_custom_call.1} parent=1 // pred_region
      %133 = dma.done [#allocation9], 256
    $region53: #{tpu_custom_call.1} parent=1 // pred_fallthru
      _
    // Predicated region
    $region54: #{tpu_custom_call.1} parent=1 // pred_check
      _
    $region55: #{tpu_custom_call.1} parent=1 // pred_check_branch
      %135 = sbr.rel (0) target = $region57
    $region56: #{tpu_custom_call.1} parent=1 // pred_region
      %136 = dma.done [#allocation9], 256
    $region57: #{tpu_custom_call.1} parent=1 // pred_fallthru
      _
    // Predicated region
    $region58: #{tpu_custom_call.1} parent=1 // pred_check
      _
    $region59: #{tpu_custom_call.1} parent=1 // pred_check_branch
      %138 = sbr.rel (0) target = $region61
    $region60: #{tpu_custom_call.1} parent=1 // pred_region
      %139 = dma.done [#allocation12], 256
    $region61: #{tpu_custom_call.1} parent=1 // pred_fallthru
      _
    // Predicated region
    $region62: #{tpu_custom_call.1} parent=1 // pred_check
      _
    $region63: #{tpu_custom_call.1} parent=1 // pred_check_branch
      %141 = sbr.rel (0) target = $region65
    $region64: #{tpu_custom_call.1} parent=1 // pred_region
      %142 = dma.done [#allocation12], 16
    $region65: #{tpu_custom_call.1} parent=1 // pred_fallthru
      _
    // Predicated region
    $region66: #{tpu_custom_call.1} parent=1 // pred_check
      _
    $region67: #{tpu_custom_call.1} parent=1 // pred_check_branch
      %144 = sbr.rel (0) target = $region69
    $region68: #{tpu_custom_call.1} parent=1 // pred_region
      %145 = dma.done [#allocation15], 16
    $region69: #{tpu_custom_call.1} parent=1 // pred_fallthru
      _
    // Predicated region
    $region70: #{tpu_custom_call.1} parent=1 // pred_check
      _
    $region71: #{tpu_custom_call.1} parent=1 // pred_check_branch
      %147 = sbr.rel (0) target = $region73
    $region72: #{tpu_custom_call.1} parent=1 // pred_region
      %148 = dma.done [#allocation15], 16
    $region73: #{tpu_custom_call.1} parent=1 // pred_fallthru
      _
    %v150 = vld [vmem:[#allocation2] sm:$0xff]
    %v151 = vld [vmem:[#allocation2 + $0x8] sm:$0xff]
    %vm152 = vcmask 261120
    %v153 = vsel %vm152, %v150, 0.0
    %154 = vadd.xlane.f32.xlu0 %v153
    %v155 = vpop.xlane.xlu0 %154
    %v156 = vsel %vm152, %v151, 0.0
    %157 = vadd.xlane.f32.xlu0 %v156
    %v158 = vpop.xlane.xlu0 %157
    %v159 = vrcp.pop 32.0
    %v160 = vmul.f32 %v155, %v159
    %v161 = vmul.f32 %v158, %v159
    %v162 = vsub.f32 %v150, %v160
    %v163 = vsub.f32 %v151, %v161
    %v164 = vmul.f32 %v162, %v162
    %v165 = vmul.f32 %v163, %v163
    %v166 = vsel %vm152, %v164, 0.0
    %167 = vadd.xlane.f32.xlu0 %v166
    %v168 = vpop.xlane.xlu0 %167
    %v169 = vsel %vm152, %v165, 0.0
    %170 = vadd.xlane.f32.xlu0 %v169
    %v171 = vpop.xlane.xlu0 %170
    %v172 = vmul.f32 %v168, %v159
    %v173 = vmul.f32 %v171, %v159
    %v174 = vadd.f32 %v172, 1e-05
    %v175 = vadd.f32 %v173, 1e-05
    %v176 = vrsqrt.pop %v174
    %v177 = vrsqrt.pop %v175
    %v178 = vmul.f32 %v162, %v176
    %v179 = vmul.f32 %v163, %v177
    %v180 = vld [vmem:[#allocation5] sm:$0x1]
    %v182 = vlaneseq
    %v183 = vshrl.u32 %v182, 7
    %v184 = vsub.s32 0, %v183
    %v185 = vrot.slane %v180, %v184
    %v187 = vmul.f32 %v178, %v185
    %v188 = vmul.f32 %v179, %v185
    %v189 = vld [vmem:[#allocation7] sm:$0x1]
    %v191 = vlaneseq
    %v192 = vshrl.u32 %v191, 7
    %v193 = vsub.s32 0, %v192
    %v194 = vrot.slane %v189, %v193
    %v196 = vadd.f32 %v187, %v194
    %v197 = vadd.f32 %v188, %v194
    %v198 = vpack.c.bf16 %v197, %v196
    %v199 = vld [vmem:[#allocation8] sm:$0xf]
    %v200 = vld [vmem:[#allocation8 + $0x4] sm:$0xf]
    %v201 = vld [vmem:[#allocation8 + $0x8] sm:$0xf]
    %v202 = vld [vmem:[#allocation8 + $0xc] sm:$0xf]
    %v203 = vld [vmem:[#allocation13] sm:$0x1]
    %v205 = vlaneseq
    %v206 = vshrl.u32 %v205, 7
    %v207 = vsub.s32 0, %v206
    %v208 = vrot.slane %v203, %v207
    %v214 = vunpack.c.l.b16 %v199
    %v215 = vunpack.c.l.b16 %v200
    %v216 = vunpack.c.l.b16 %v201
    %v217 = vunpack.c.l.b16 %v202
    %v218 = vpack.c.b16 %v215, %v214
    %v219 = vpack.c.b16 %v217, %v216
    %v223 = vsel %vm152, %v198, 0
    %225 = vmatprep.subr.bf16.mxu0 0
    %226 = vmatpush1.bf16.msra.mxu0 %v218
    %227 = vmatprep.subr.bf16.mxu0 0
    %228 = vmatpush1.bf16.msra.mxu0 %v219
    %229 = vmatprep.subr.bf16.mxu0 0
    %230 = vmatpush1.bf16.msra.mxu0 0
    %231 = vmatprep.subr.bf16.mxu0 0
    %232 = vmatpush1.bf16.msra.mxu0 0
    %233 = vmatprep.subr.bf16.mxu0 0
    %234 = vmatpush1.bf16.msra.mxu0 0
    %235 = vmatprep.subr.bf16.mxu0 0
    %236 = vmatpush1.bf16.msra.mxu0 0
    %237 = vmatprep.subr.bf16.mxu0 0
    %238 = vmatpush1.bf16.msra.mxu0 0
    %239 = vmatprep.subr.bf16.mxu0 0
    %240 = vmatpush1.bf16.msra.mxu0 0
    %241 = vmatprep.subr.bf16.mxu0 0
    %242 = vmatpush1.bf16.msra.mxu0 0
    %243 = vmatprep.subr.bf16.mxu0 0
    %244 = vmatpush1.bf16.msra.mxu0 0
    %245 = vmatprep.subr.bf16.mxu0 0
    %246 = vmatpush1.bf16.msra.mxu0 0
    %247 = vmatprep.subr.bf16.mxu0 0
    %248 = vmatpush1.bf16.msra.mxu0 0
    %249 = vmatprep.subr.bf16.mxu0 0
    %250 = vmatpush1.bf16.msra.mxu0 0
    %251 = vmatprep.subr.bf16.mxu0 0
    %252 = vmatpush1.bf16.msra.mxu0 0
    %253 = vmatprep.subr.bf16.mxu0 0
    %254 = vmatpush1.bf16.msra.mxu0 0
    %255 = vmatprep.subr.bf16.mxu0 0
    %256 = vmatpush1.bf16.msra.mxu0 0
    %257 = vmatprep.mubr.bf16.mxu0 0
    %258 = vmatmul.mubr.bf16.gmra.mrb[0].mxu0 %v223
    %v259 = vpop.f32.mrb[0].mxu0
    %v260 = vadd.f32 %v208, %v259
    %v261 = vpop.f32.mrb[0].mxu0
    %v262 = vpop.f32.mrb[0].mxu0
    %v263 = vadd.f32 %v208, %v262
    %v264 = vpop.f32.mrb[0].mxu0
    %265 = vdwg.mxu0
    %v266 = vld [vmem:[#allocation10] sm:$0xf]
    %v267 = vld [vmem:[#allocation10 + $0x4] sm:$0xf]
    %v268 = vld [vmem:[#allocation10 + $0x8] sm:$0xf]
    %v269 = vld [vmem:[#allocation10 + $0xc] sm:$0xf]
    %v270 = vld [vmem:[#allocation14] sm:$0x1]
    %v272 = vlaneseq
    %v273 = vshrl.u32 %v272, 7
    %v274 = vsub.s32 0, %v273
    %v275 = vrot.slane %v270, %v274
    %v281 = vunpack.c.l.b16 %v266
    %v282 = vunpack.c.l.b16 %v267
    %v283 = vunpack.c.l.b16 %v268
    %v284 = vunpack.c.l.b16 %v269
    %v285 = vpack.c.b16 %v282, %v281
    %v286 = vpack.c.b16 %v284, %v283
    %289 = vmatprep.subr.bf16.mxu0 0
    %290 = vmatpush1.bf16.msra.mxu0 %v285
    %291 = vmatprep.subr.bf16.mxu0 0
    %292 = vmatpush1.bf16.msra.mxu0 %v286
    %293 = vmatprep.subr.bf16.mxu0 0
    %294 = vmatpush1.bf16.msra.mxu0 0
    %295 = vmatprep.subr.bf16.mxu0 0
    %296 = vmatpush1.bf16.msra.mxu0 0
    %297 = vmatprep.subr.bf16.mxu0 0
    %298 = vmatpush1.bf16.msra.mxu0 0
    %299 = vmatprep.subr.bf16.mxu0 0
    %300 = vmatpush1.bf16.msra.mxu0 0
    %301 = vmatprep.subr.bf16.mxu0 0
    %302 = vmatpush1.bf16.msra.mxu0 0
    %303 = vmatprep.subr.bf16.mxu0 0
    %304 = vmatpush1.bf16.msra.mxu0 0
    %305 = vmatprep.subr.bf16.mxu0 0
    %306 = vmatpush1.bf16.msra.mxu0 0
    %307 = vmatprep.subr.bf16.mxu0 0
    %308 = vmatpush1.bf16.msra.mxu0 0
    %309 = vmatprep.subr.bf16.mxu0 0
    %310 = vmatpush1.bf16.msra.mxu0 0
    %311 = vmatprep.subr.bf16.mxu0 0
    %312 = vmatpush1.bf16.msra.mxu0 0
    %313 = vmatprep.subr.bf16.mxu0 0
    %314 = vmatpush1.bf16.msra.mxu0 0
    %315 = vmatprep.subr.bf16.mxu0 0
    %316 = vmatpush1.bf16.msra.mxu0 0
    %317 = vmatprep.subr.bf16.mxu0 0
    %318 = vmatpush1.bf16.msra.mxu0 0
    %319 = vmatprep.subr.bf16.mxu0 0
    %320 = vmatpush1.bf16.msra.mxu0 0
    %321 = vmatprep.mubr.bf16.mxu0 0
    %322 = vmatmul.mubr.bf16.gmra.mrb[0].mxu0 %v223
    %v323 = vpop.f32.mrb[0].mxu0
    %v324 = vadd.f32 %v275, %v323
    %v325 = vpop.f32.mrb[0].mxu0
    %v326 = vpop.f32.mrb[0].mxu0
    %v327 = vadd.f32 %v275, %v326
    %v328 = vpop.f32.mrb[0].mxu0
    %329 = vdwg.mxu0
    %v330 = vld [vmem:[#allocation11] sm:$0xf]
    %v331 = vld [vmem:[#allocation11 + $0x4] sm:$0xf]
    %v332 = vld [vmem:[#allocation11 + $0x8] sm:$0xf]
    %v333 = vld [vmem:[#allocation11 + $0xc] sm:$0xf]
    %v334 = vld [vmem:[#allocation16] sm:$0x1]
    %v336 = vlaneseq
    %v337 = vshrl.u32 %v336, 7
    %v338 = vsub.s32 0, %v337
    %v339 = vrot.slane %v334, %v338
    %v345 = vunpack.c.l.b16 %v330
    %v346 = vunpack.c.l.b16 %v331
    %v347 = vunpack.c.l.b16 %v332
    %v348 = vunpack.c.l.b16 %v333
    %v349 = vpack.c.b16 %v346, %v345
    %v350 = vpack.c.b16 %v348, %v347
    %353 = vmatprep.subr.bf16.mxu0 0
    %354 = vmatpush1.bf16.msra.mxu0 %v349
    %355 = vmatprep.subr.bf16.mxu0 0
    %356 = vmatpush1.bf16.msra.mxu0 %v350
    %357 = vmatprep.subr.bf16.mxu0 0
    %358 = vmatpush1.bf16.msra.mxu0 0
    %359 = vmatprep.subr.bf16.mxu0 0
    %360 = vmatpush1.bf16.msra.mxu0 0
    %361 = vmatprep.subr.bf16.mxu0 0
    %362 = vmatpush1.bf16.msra.mxu0 0
    %363 = vmatprep.subr.bf16.mxu0 0
    %364 = vmatpush1.bf16.msra.mxu0 0
    %365 = vmatprep.subr.bf16.mxu0 0
    %366 = vmatpush1.bf16.msra.mxu0 0
    %367 = vmatprep.subr.bf16.mxu0 0
    %368 = vmatpush1.bf16.msra.mxu0 0
    %369 = vmatprep.subr.bf16.mxu0 0
    %370 = vmatpush1.bf16.msra.mxu0 0
    %371 = vmatprep.subr.bf16.mxu0 0
    %372 = vmatpush1.bf16.msra.mxu0 0
    %373 = vmatprep.subr.bf16.mxu0 0
    %374 = vmatpush1.bf16.msra.mxu0 0
    %375 = vmatprep.subr.bf16.mxu0 0
    %376 = vmatpush1.bf16.msra.mxu0 0
    %377 = vmatprep.subr.bf16.mxu0 0
    %378 = vmatpush1.bf16.msra.mxu0 0
    %379 = vmatprep.subr.bf16.mxu0 0
    %380 = vmatpush1.bf16.msra.mxu0 0
    %381 = vmatprep.subr.bf16.mxu0 0
    %382 = vmatpush1.bf16.msra.mxu0 0
    %383 = vmatprep.subr.bf16.mxu0 0
    %384 = vmatpush1.bf16.msra.mxu0 0
    %385 = vmatprep.mubr.bf16.mxu0 0
    %386 = vmatmul.mubr.bf16.gmra.mrb[0].mxu0 %v223
    %v387 = vpop.f32.mrb[0].mxu0
    %v388 = vadd.f32 %v339, %v387
    %v389 = vpop.f32.mrb[0].mxu0
    %v390 = vpop.f32.mrb[0].mxu0
    %v391 = vadd.f32 %v339, %v390
    %v392 = vpop.f32.mrb[0].mxu0
    %393 = vdwg.mxu0
    %v394 = vpack.c.bf16 %v263, %v260
    %v396 = vunpack.c.l.b16 %v394
    %v397 = vunpack.c.h.b16 %v394
    %v398 = vpack.c.b16 %v396, %v396
    %v399 = vpack.c.b16 %v397, %v397
    %vm402 = vcmask 257024
    %403 = vst.msk [vmem:[#allocation17] sm:$0xf] %vm402, %v398
    %404 = vst.msk [vmem:[#allocation17 + $0x4] sm:$0xf] %vm402, %v399
    %v405 = vpack.c.bf16 %v327, %v324
    %v407 = vunpack.c.l.b16 %v405
    %v408 = vunpack.c.h.b16 %v405
    %v409 = vpack.c.b16 %v407, %v407
    %v410 = vpack.c.b16 %v408, %v408
    %413 = vst.msk [vmem:[#allocation18] sm:$0xf] %vm402, %v409
    %414 = vst.msk [vmem:[#allocation18 + $0x4] sm:$0xf] %vm402, %v410
    %v415 = vpack.c.bf16 %v391, %v388
    %v417 = vunpack.c.l.b16 %v415
    %v418 = vunpack.c.h.b16 %v415
    %v419 = vpack.c.b16 %v417, %v417
    %v420 = vpack.c.b16 %v418, %v418
    %423 = vst.msk [vmem:[#allocation20] sm:$0xf] %vm402, %v419
    %424 = vst.msk [vmem:[#allocation20 + $0x4] sm:$0xf] %vm402, %v420
    // Predicated region
    $region74: #{tpu_custom_call.1} parent=1 // pred_check
      _
    $region75: #{tpu_custom_call.1} parent=1 // pred_check_branch
      %426 = sbr.rel (0) target = $region77
    $region76: #{tpu_custom_call.1} parent=1 // pred_region
      %s428 = ssub.s32 128, 128
      %429 = vsyncadd [#allocation4], %s428
      %s430 = sshll.u32 [#allocation17], 4
      %s431 = int_to_ptr.vmem [resolvable:$true] %s430
      %436 = dma.vmem_to_hbm [thread:$0]  %s431, 128, %s9, [#allocation4], 64, 64, 4
    $region77: #{tpu_custom_call.1} parent=1 // pred_fallthru
      _
    // Predicated region
    $region78: #{tpu_custom_call.1} parent=1 // pred_check
      _
    $region79: #{tpu_custom_call.1} parent=1 // pred_check_branch
      %438 = sbr.rel (0) target = $region81
    $region80: #{tpu_custom_call.1} parent=1 // pred_region
      %s440 = ssub.s32 128, 128
      %441 = vsyncadd [#allocation19], %s440
      %s442 = sshll.u32 [#allocation18], 4
      %s443 = int_to_ptr.vmem [resolvable:$true] %s442
      %448 = dma.vmem_to_hbm [thread:$0]  %s443, 128, %s10, [#allocation19], 64, 64, 4
    $region81: #{tpu_custom_call.1} parent=1 // pred_fallthru
      _
    // Predicated region
    $region82: #{tpu_custom_call.1} parent=1 // pred_check
      _
    $region83: #{tpu_custom_call.1} parent=1 // pred_check_branch
      %450 = sbr.rel (0) target = $region85
    $region84: #{tpu_custom_call.1} parent=1 // pred_region
      %s452 = ssub.s32 128, 128
      %453 = vsyncadd [#allocation19], %s452
      %s454 = sshll.u32 [#allocation20], 4
      %s455 = int_to_ptr.vmem [resolvable:$true] %s454
      %460 = dma.vmem_to_hbm [thread:$0]  %s455, 128, %s11, [#allocation19], 64, 64, 4
    $region85: #{tpu_custom_call.1} parent=1 // pred_fallthru
      _
    // Predicated region
    $region86: #{tpu_custom_call.1} parent=1 // pred_check
      _
    $region87: #{tpu_custom_call.1} parent=1 // pred_check_branch
      %462 = sbr.rel (0) target = $region89
    $region88: #{tpu_custom_call.1} parent=1 // pred_region
      %463 = dma.done [#allocation4], 128
    $region89: #{tpu_custom_call.1} parent=1 // pred_fallthru
      _
    // Predicated region
    $region90: #{tpu_custom_call.1} parent=1 // pred_check
      _
    $region91: #{tpu_custom_call.1} parent=1 // pred_check_branch
      %465 = sbr.rel (0) target = $region93
    $region92: #{tpu_custom_call.1} parent=1 // pred_region
      %466 = dma.done [#allocation19], 128
    $region93: #{tpu_custom_call.1} parent=1 // pred_fallthru
      _
    // Predicated region
    $region94: #{tpu_custom_call.1} parent=1 // pred_check
      _
    $region95: #{tpu_custom_call.1} parent=1 // pred_check_branch
      %468 = sbr.rel (0) target = $region97
    $region96: #{tpu_custom_call.1} parent=1 // pred_region
      %469 = dma.done [#allocation19], 128
    $region97: #{tpu_custom_call.1} parent=1 // pred_fallthru
      _
    %470 = vsyncpa [#allocation3], 1
    %471 = vsyncpa [#allocation6], 1
    %472 = vsyncpa [#allocation9], 1
    %473 = vsyncpa [#allocation12], 1
    %474 = vsyncpa [#allocation15], 1
    %475 = vsyncpa [#allocation4], 1
    %476 = vsyncpa [#allocation19], 1

</llo_original>
